<compile_context>
chip_gen: v5e
topology: v5e:2x2
jax: 0.10.0
libtpu: 0.0.40
codegen_flags: <defaults>
</compile_context>

<pallas_src>
import math
import functools

import jax
import jax.numpy as jnp
from jax.experimental import pallas as pl
from jax.experimental.pallas import tpu as pltpu


def _embeddings_kernel(p_ref, w_ref, pos_bias_ref, cls_row_ref, o_ref, *,
                       flatten):
    """One grid step = Bt images.

    p_ref       : (Bt, S, K)    unfolded patches (matmul dtype, e.g. bf16)
    w_ref       : (K, H)        conv weight as a GEMM weight (VMEM resident)
    pos_bias_ref: (S, H)  f32   pre-fused  pos_emb[1:] + conv bias
    cls_row_ref : (1, H)  f32   pre-fused  cls_token + pos_emb[0]
    o_ref       : (Bt, S+1, H)  output block
    """
    Bt, S, K = p_ref.shape
    Hd = w_ref.shape[1]
    pos_bias = pos_bias_ref[...]                        # (S, H) f32
    cls_out = cls_row_ref[...].astype(o_ref.dtype)      # (1, H)

    if flatten:
        # S is sublane-aligned: collapse (Bt, S) -> Bt*S (layout no-op) and do
        # one big MXU matmul so M = Bt*S fills the MXU M dimension.
        x = p_ref[...].reshape(Bt * S, K)
        y = jnp.dot(x, w_ref[...], preferred_element_type=jnp.float32)
        y = y.reshape(Bt, S, Hd) + pos_bias[None]
        o_ref[:, pl.ds(1, S), :] = y.astype(o_ref.dtype)
    else:
        # S not a multiple of 8: per-image dots avoid a relayout-copy reshape.
        for i in range(Bt):
            y = jnp.dot(p_ref[i], w_ref[...],
                        preferred_element_type=jnp.float32)
            o_ref[i, pl.ds(1, S), :] = (y + pos_bias).astype(o_ref.dtype)

    # cls row (batch-independent) written separately -> no in-kernel concat.
    for i in range(Bt):
        o_ref[i, pl.ds(0, 1), :] = cls_out
    # Dropout: eval-mode identity.


def _choose_block_batch(B, requested=None, target=8):
    """Pick Bt | B, Bt <= target; prefer an even grid length (v7x 2 TCs)."""
    divs = [d for d in range(1, B + 1) if B % d == 0]
    if requested is not None:
        return max(d for d in divs if d <= max(1, requested))
    cands = [d for d in divs if d <= target]
    even = [d for d in cands if (B // d) % 2 == 0]
    return max(even) if even else max(cands)


@functools.partial(
    jax.jit,
    static_argnames=("patch_size", "compute_dtype", "out_dtype", "block_batch"))
def embeddings_forward(x, conv_w, conv_b, cls_token, pos_emb, *, patch_size,
                       compute_dtype=jnp.bfloat16, out_dtype=None,
                       block_batch=None):
    """x: [B, C, IH, IW]; conv_w: [H, C, P, P]; conv_b: [H];
    cls_token: [1, 1, H]; pos_emb: [1, S+1, H]  ->  [B, S+1, H]."""
    B, C, IH, IW = x.shape
    P = patch_size
    assert IH % P == 0 and IW % P == 0
    nPh, nPw = IH // P, IW // P
    S = nPh * nPw
    Hd = conv_w.shape[0]
    K = C * P * P
    out_dtype = x.dtype if out_dtype is None else out_dtype

    Bt = _choose_block_batch(B, block_batch)
    grid_b = B // Bt

    # --- unfold the stride==kernel conv into a GEMM (layout plumbing) -------
    # TODO(synk): fold the unfold into the kernel (grid over image strips) if a
    # profile shows XLA materializes this patch slab in HBM instead of fusing.
    patches = x.reshape(B, C, nPh, P, nPw, P)
    patches = patches.transpose(0, 2, 4, 1, 3, 5).reshape(B, S, K)
    w_mat = conv_w.reshape(Hd, K).T                     # (K, H), same ordering

    if compute_dtype is not None:
        patches = patches.astype(compute_dtype)
        w_mat = w_mat.astype(compute_dtype)

    # Pre-fused epilogue constants (batch-independent, computed once per call).
    pos = pos_emb.reshape(S + 1, Hd).astype(jnp.float32)
    pos_bias = pos[1:] + conv_b.reshape(1, Hd).astype(jnp.float32)   # (S, H)
    cls_row = cls_token.reshape(1, Hd).astype(jnp.float32) + pos[:1]  # (1, H)

    in_it = jnp.dtype(patches.dtype).itemsize
    out_it = jnp.dtype(out_dtype).itemsize

    cost = pl.CostEstimate(
        flops=2 * B * S * K * Hd,
        transcendentals=0,
        bytes_accessed=(B * S * K * in_it + K * Hd * in_it
                        + B * (S + 1) * Hd * out_it + (S + 1) * Hd * 4))

    # VMEM: double-buffered per-step tiles + resident operands + f32
    # intermediates (y).  Floor at the 32 MiB scoped default; cap at 48 MiB so
    # v7x (64 MiB physical VMEM per TC) keeps headroom for compiler scratch.
    est = (2 * Bt * S * K * in_it            # patches tiles (double-buffered)
           + 2 * Bt * (S + 1) * Hd * out_it  # output tiles (double-buffered)
           + 2 * K * Hd * in_it              # W (resident, 2 bufs)
           + 2 * (S + 1) * Hd * 4            # pos_bias + cls_row (resident)
           + 2 * Bt * S * Hd * 4)            # in-kernel f32 intermediates
    vmem_limit = int(min(48 * 2**20, max(32 * 2**20, 2 * est)))

    flatten = (S % 8 == 0)

    out = pl.pallas_call(
        functools.partial(_embeddings_kernel, flatten=flatten),
        out_shape=jax.ShapeDtypeStruct((B, S + 1, Hd), out_dtype),
        grid_spec=pltpu.PrefetchScalarGridSpec(
            num_scalar_prefetch=0,
            grid=(grid_b,),
            in_specs=[
                pl.BlockSpec((Bt, S, K), lambda b: (b, 0, 0)),   # patches tile
                pl.BlockSpec((K, Hd), lambda b: (0, 0)),         # W (resident)
                pl.BlockSpec((S, Hd), lambda b: (0, 0)),         # pos + bias
                pl.BlockSpec((1, Hd), lambda b: (0, 0)),         # cls + pos[0]
            ],
            out_specs=pl.BlockSpec((Bt, S + 1, Hd), lambda b: (b, 0, 0)),
        ),
        compiler_params=pltpu.CompilerParams(
            dimension_semantics=("parallel",),
            vmem_limit_bytes=vmem_limit),
        cost_estimate=cost,
    )(patches, w_mat, pos_bias, cls_row)

    return out


def init_params(key, config):
    """Deterministic params matching the PyTorch module's shapes/init."""
    C = config["num_channels"]
    P = config["patch_size"]
    Hd = config["hidden_size"]
    S = (config["image_size"] // P) ** 2
    kw, kb, kc, kp = jax.random.split(key, 4)
    fan_in = C * P * P
    bound = 1.0 / math.sqrt(fan_in)           # nn.Conv2d default init
    conv_w = jax.random.uniform(kw, (Hd, C, P, P), jnp.float32, -bound, bound)
    conv_b = jax.random.uniform(kb, (Hd,), jnp.float32, -bound, bound)
    cls_token = jax.random.normal(kc, (1, 1, Hd), dtype=jnp.float32)
    pos_emb = jax.random.normal(kp, (1, S + 1, Hd), dtype=jnp.float32)
    return conv_w, conv_b, cls_token, pos_emb


def _reference(x, conv_w, conv_b, cls_token, pos_emb, P):
    """Plain-JAX reference via lax.conv (independent of the unfold path)."""
    B = x.shape[0]
    Hd = conv_w.shape[0]
    conv = jax.lax.conv_general_dilated(
        x, conv_w, window_strides=(P, P), padding="VALID",
        dimension_numbers=("NCHW", "OIHW", "NCHW"))          # (B, H, nP, nP)
    conv = conv + conv_b[None, :, None, None]
    S = conv.shape[2] * conv.shape[3]
    ref_patches = conv.reshape(B, Hd, S).transpose(0, 2, 1)   # (B, S, H)
    ref = jnp.concatenate(
        [jnp.broadcast_to(cls_token, (B, 1, Hd)), ref_patches], axis=1)
    return ref + pos_emb                                      # dropout == id


if __name__ == "__main__":
    config = {"image_size": 16, "patch_size": 4, "num_channels": 4,
              "hidden_size": 32, "hidden_dropout_prob": 0.1}
    C, IH = config["num_channels"], config["image_size"]
    P, Hd = config["patch_size"], config["hidden_size"]
    S = (IH // P) ** 2

    key = jax.random.PRNGKey(0)
    kx, kp = jax.random.split(key)
    conv_w, conv_b, cls_token, pos_emb = init_params(kp, config)

    # --- B=2: f32 compute path, tight tolerance --------------------------
    B = 2
    x = jax.random.normal(kx, (B, C, IH, IH), dtype=jnp.float32)
    ref = _reference(x, conv_w, conv_b, cls_token, pos_emb, P)

    out_f32 = embeddings_forward(x, conv_w, conv_b, cls_token, pos_emb,
                                 patch_size=P, compute_dtype=jnp.float32)
    out_f32 = jax.block_until_ready(out_f32)
    assert out_f32.shape == (B, S + 1, Hd)
    assert jnp.allclose(out_f32, ref, atol=1e-5, rtol=1e-5)

    # --- B=2: default bf16 MXU inputs, bf16-level tolerance --------------
    out_bf16 = embeddings_forward(x, conv_w, conv_b, cls_token, pos_emb,
                                  patch_size=P)
    out_bf16 = jax.block_until_ready(out_bf16)
    assert jnp.allclose(out_bf16, ref, atol=3e-2, rtol=3e-2)

    # --- B=8: exercises batch blocking (Bt=4, grid=(2,)) ------------------
    B2 = 8
    x2 = jax.random.normal(jax.random.fold_in(kx, 1), (B2, C, IH, IH),
                           dtype=jnp.float32)
    ref2 = _reference(x2, conv_w, conv_b, cls_token, pos_emb, P)
    out2 = embeddings_forward(x2, conv_w, conv_b, cls_token, pos_emb,
                              patch_size=P)
    out2 = jax.block_until_ready(out2)
    assert out2.shape == (B2, S + 1, Hd)
    assert jnp.allclose(out2, ref2, atol=3e-2, rtol=3e-2)

    print("KERNEL_OK")
</pallas_src>

<mosaic_0001>
module attributes {stable_mosaic.version = 11 : i64} {
  func.func @_embeddings_kernel(%arg0: i32, %arg1: memref<1x16x64xf32, #tpu.memory_space<vmem>>, %arg2: memref<64x32xf32, #tpu.memory_space<vmem>>, %arg3: memref<16x32xf32, #tpu.memory_space<vmem>>, %arg4: memref<1x32xf32, #tpu.memory_space<vmem>>, %arg5: memref<1x17x32xf32, #tpu.memory_space<vmem>>) attributes {dimension_semantics = [#tpu.dimension_semantics<parallel>], iteration_bounds = array<i64: 2>, scalar_prefetch = 0 : i64, scratch_operands = 0 : i64, tpu.core_type = #tpu.core_type<tc>, window_params = [{transform_indices = @transform_0, window_bounds = array<i64: 1, 16, 64>}, {pipeline_mode = #tpu.pipeline_mode<synchronous>, transform_indices = @transform_1, window_bounds = array<i64: 64, 32>}, {pipeline_mode = #tpu.pipeline_mode<synchronous>, transform_indices = @transform_2, window_bounds = array<i64: 16, 32>}, {pipeline_mode = #tpu.pipeline_mode<synchronous>, transform_indices = @transform_3, window_bounds = array<i64: 1, 32>}, {transform_indices = @transform_4, window_bounds = array<i64: 1, 17, 32>}]} {
    %c0 = arith.constant 0 : index
    %c0_0 = arith.constant 0 : index
    %0 = vector.load %arg3[%c0, %c0_0] : memref<16x32xf32, #tpu.memory_space<vmem>>, vector<16x32xf32>
    %c0_1 = arith.constant 0 : index
    %c0_2 = arith.constant 0 : index
    %1 = vector.load %arg4[%c0_1, %c0_2] : memref<1x32xf32, #tpu.memory_space<vmem>>, vector<1x32xf32>
    %c0_3 = arith.constant 0 : index
    %c0_4 = arith.constant 0 : index
    %c0_5 = arith.constant 0 : index
    %2 = vector.load %arg1[%c0_3, %c0_4, %c0_5] : memref<1x16x64xf32, #tpu.memory_space<vmem>>, vector<1x16x64xf32>
    %3 = vector.shape_cast %2 : vector<1x16x64xf32> to vector<16x64xf32>
    %c0_6 = arith.constant 0 : index
    %c0_7 = arith.constant 0 : index
    %4 = vector.load %arg2[%c0_6, %c0_7] : memref<64x32xf32, #tpu.memory_space<vmem>>, vector<64x32xf32>
    %cst = arith.constant dense<0.000000e+00> : vector<16x32xf32>
    %5 = tpu.matmul %3, %4, %cst {dimension_numbers = #tpu.dot_dimension_numbers<[1], [0], [0], [1], [0, 0, 1, 1], [], []>} : vector<16x64xf32>, vector<64x32xf32>, vector<16x32xf32> -> vector<16x32xf32>
    %6 = vector.shape_cast %5 : vector<16x32xf32> to vector<1x16x32xf32>
    %7 = vector.shape_cast %0 : vector<16x32xf32> to vector<1x16x32xf32>
    %8 = arith.addf %6, %7 : vector<1x16x32xf32>
    %c0_8 = arith.constant 0 : index
    %c1 = arith.constant 1 : index
    %c0_9 = arith.constant 0 : index
    %9 = vector.load %arg5[%c0_8, %c1, %c0_9] : memref<1x17x32xf32, #tpu.memory_space<vmem>>, vector<1x16x32xf32>
    tpu.vector_store %arg5[%c0_8, %c1, %c0_9], %8 {strides = array<i32>} : memref<1x17x32xf32, #tpu.memory_space<vmem>>, vector<1x16x32xf32>,
    %c0_10 = arith.constant 0 : index
    %c0_11 = arith.constant 0 : index
    %c0_12 = arith.constant 0 : index
    %10 = vector.load %arg5[%c0_10, %c0_11, %c0_12] : memref<1x17x32xf32, #tpu.memory_space<vmem>>, vector<1x1x32xf32>
    %11 = vector.shape_cast %10 : vector<1x1x32xf32> to vector<1x32xf32>
    %12 = vector.shape_cast %1 : vector<1x32xf32> to vector<1x1x32xf32>
    tpu.vector_store %arg5[%c0_10, %c0_11, %c0_12], %12 {strides = array<i32>} : memref<1x17x32xf32, #tpu.memory_space<vmem>>, vector<1x1x32xf32>,
    return
  }
  func.func @transform_0(%arg0: i32) -> (i32, i32, i32) {
    %c0_i32 = arith.constant 0 : i32
    %c0_i32_0 = arith.constant 0 : i32
    %c0_i32_1 = arith.constant 0 : i32
    return %arg0, %c0_i32, %c0_i32_0 : i32, i32, i32
  }
  func.func @transform_1(%arg0: i32) -> (i32, i32) {
    %c0_i32 = arith.constant 0 : i32
    %c0_i32_0 = arith.constant 0 : i32
    %c0_i32_1 = arith.constant 0 : i32
    return %c0_i32, %c0_i32_0 : i32, i32
  }
  func.func @transform_2(%arg0: i32) -> (i32, i32) {
    %c0_i32 = arith.constant 0 : i32
    %c0_i32_0 = arith.constant 0 : i32
    %c0_i32_1 = arith.constant 0 : i32
    return %c0_i32, %c0_i32_0 : i32, i32
  }
  func.func @transform_3(%arg0: i32) -> (i32, i32) {
    %c0_i32 = arith.constant 0 : i32
    %c0_i32_0 = arith.constant 0 : i32
    %c0_i32_1 = arith.constant 0 : i32
    return %c0_i32, %c0_i32_0 : i32, i32
  }
  func.func @transform_4(%arg0: i32) -> (i32, i32, i32) {
    %c0_i32 = arith.constant 0 : i32
    %c0_i32_0 = arith.constant 0 : i32
    %c0_i32_1 = arith.constant 0 : i32
    return %arg0, %c0_i32, %c0_i32_0 : i32, i32, i32
  }
}

</mosaic_0001>

<llo_original>
// kernel: embeddings_forward.1
$region0: #{embeddings_forward.1}
  #allocation0 [shape = 'u32[]', space=smem, size = 0x4, offset = 0x4, fixed_abs, tag = 'smem constant byte address 0x4 - core index']
  #allocation1 [shape = 'u32[72,128]{1,0:T(1,128)}', space=vmem, size = 0x9000, scoped, tag = 'internal scratch']
  %s0 = inlined_call_operand.vmem [shape: f32[2,16,64], index: 0, kind: input, shape index: {}]
  %s1 = inlined_call_operand.vmem [shape: f32[64,32], index: 1, kind: input, shape index: {}]
  %s2 = inlined_call_operand.vmem [shape: f32[16,32], index: 2, kind: input, shape index: {}]
  %s3 = inlined_call_operand.vmem [shape: f32[1,32], index: 3, kind: input, shape index: {}]
  %s4 = inlined_call_operand.vmem [shape: f32[2,17,32], index: 4, kind: output, shape index: {}]
  %s5 = sld [smem:[#allocation0]]
  $region49: #{embeddings_forward.1} parent=0
    _
  %s7 = ssub.s32 1, %s5
  %s8 = scalar_select 0, %s7, %s5
  loop: start=0, step=1, limit=4
  $region2: #{embeddings_forward.1} parent=0 // loop_pre_header
    _
  $region3: #{embeddings_forward.1} parent=0 // loop_header
    %s10 = sphi 0, %s14
    %p11 = scmp.ge.s32.totalorder %s10, 4
    %s20 = sphi 0, %s22
    %s23 = sphi 0, %s20
    %s24 = sphi 0, %s23
    %s40 = sphi 0, %s24
    %s44 = sphi 0, %s44
    %s46 = sphi 0, %s44
    %s47 = sphi 0, %s46
    %s61 = sphi 0, %s47
    %s65 = sphi 0, %s65
    %s67 = sphi 0, %s65
    %s68 = sphi 0, %s67
    %s82 = sphi 0, %s68
    %s86 = sphi 0, %s86
    %s88 = sphi 0, %s86
    %s89 = sphi 0, %s88
    %s103 = sphi 0, %s89
    %s109 = sphi 0, %s111
    %s112 = sphi 0, %s109
    %s113 = sphi 0, %s112
    %s129 = sphi 0, %s113
  $region4: #{embeddings_forward.1} parent=0 // loop_header_branch
    %13 = sbr.rel (%p11) target = $region8
  $region5: #{embeddings_forward.1} parent=0 // loop_body
    %s15 = ssub.s32 %s10, 1
    %s16 = ssub.s32 %s10, 2
    %s17 = sadd.s32 %s10, 1
    %s18 = ssub.s32 %s10, %s17
    %p19 = scmp.eq.s32.totalorder %s18, 0
    %s21 = sadd.s32 %s20, 1
    %s22 = scalar_select %p19, %s20, %s21
    %p25 = pneg %p19
    %p26 = scmp.eq.s32.totalorder %s10, 1
    %p27 = por %p25, %p26
    %p28 = scmp.ne.s32.totalorder %s20, %s23
    %p29 = scmp.eq.s32.totalorder %s10, 0
    %p30 = por %p28, %p29
    %p31 = scmp.ne.s32.totalorder %s20, %s23
    %p32 = scmp.eq.s32.totalorder %s15, 1
    %p33 = por %p31, %p32
    %p34 = scmp.ne.s32.totalorder %s23, %s24
    %p35 = scmp.eq.s32.totalorder %s15, 0
    %p36 = por %p34, %p35
    %p37 = scmp.ne.s32.totalorder %s23, %s24
    %p38 = scmp.eq.s32.totalorder %s16, 1
    %p39 = por %p37, %p38
    %p41 = scmp.ne.s32.totalorder %s24, %s40
    %p42 = scmp.eq.s32.totalorder %s16, 0
    %p43 = por %p41, %p42
    %s45 = sadd.s32 %s44, 1
    %p48 = scmp.eq.s32.totalorder %s10, 1
    %p49 = scmp.ne.s32.totalorder %s44, %s46
    %p50 = scmp.eq.s32.totalorder %s10, 0
    %p51 = por %p49, %p50
    %p52 = scmp.ne.s32.totalorder %s44, %s46
    %p53 = scmp.eq.s32.totalorder %s15, 1
    %p54 = por %p52, %p53
    %p55 = scmp.ne.s32.totalorder %s46, %s47
    %p56 = scmp.eq.s32.totalorder %s15, 0
    %p57 = por %p55, %p56
    %p58 = scmp.ne.s32.totalorder %s46, %s47
    %p59 = scmp.eq.s32.totalorder %s16, 1
    %p60 = por %p58, %p59
    %p62 = scmp.ne.s32.totalorder %s47, %s61
    %p63 = scmp.eq.s32.totalorder %s16, 0
    %p64 = por %p62, %p63
    %s66 = sadd.s32 %s65, 1
    %p69 = scmp.eq.s32.totalorder %s10, 1
    %p70 = scmp.ne.s32.totalorder %s65, %s67
    %p71 = scmp.eq.s32.totalorder %s10, 0
    %p72 = por %p70, %p71
    %p73 = scmp.ne.s32.totalorder %s65, %s67
    %p74 = scmp.eq.s32.totalorder %s15, 1
    %p75 = por %p73, %p74
    %p76 = scmp.ne.s32.totalorder %s67, %s68
    %p77 = scmp.eq.s32.totalorder %s15, 0
    %p78 = por %p76, %p77
    %p79 = scmp.ne.s32.totalorder %s67, %s68
    %p80 = scmp.eq.s32.totalorder %s16, 1
    %p81 = por %p79, %p80
    %p83 = scmp.ne.s32.totalorder %s68, %s82
    %p84 = scmp.eq.s32.totalorder %s16, 0
    %p85 = por %p83, %p84
    %s87 = sadd.s32 %s86, 1
    %p90 = scmp.eq.s32.totalorder %s10, 1
    %p91 = scmp.ne.s32.totalorder %s86, %s88
    %p92 = scmp.eq.s32.totalorder %s10, 0
    %p93 = por %p91, %p92
    %p94 = scmp.ne.s32.totalorder %s86, %s88
    %p95 = scmp.eq.s32.totalorder %s15, 1
    %p96 = por %p94, %p95
    %p97 = scmp.ne.s32.totalorder %s88, %s89
    %p98 = scmp.eq.s32.totalorder %s15, 0
    %p99 = por %p97, %p98
    %p100 = scmp.ne.s32.totalorder %s88, %s89
    %p101 = scmp.eq.s32.totalorder %s16, 1
    %p102 = por %p100, %p101
    %p104 = scmp.ne.s32.totalorder %s89, %s103
    %p105 = scmp.eq.s32.totalorder %s16, 0
    %p106 = por %p104, %p105
    %s107 = ssub.s32 %s10, %s17
    %p108 = scmp.eq.s32.totalorder %s107, 0
    %s110 = sadd.s32 %s109, 1
    %s111 = scalar_select %p108, %s109, %s110
    %p114 = pneg %p108
    %p115 = scmp.eq.s32.totalorder %s10, 1
    %p116 = por %p114, %p115
    %p117 = scmp.ne.s32.totalorder %s109, %s112
    %p118 = scmp.eq.s32.totalorder %s10, 0
    %p119 = por %p117, %p118
    %p120 = scmp.ne.s32.totalorder %s109, %s112
    %p121 = scmp.eq.s32.totalorder %s15, 1
    %p122 = por %p120, %p121
    %p123 = scmp.ne.s32.totalorder %s112, %s113
    %p124 = scmp.eq.s32.totalorder %s15, 0
    %p125 = por %p123, %p124
    %p126 = scmp.ne.s32.totalorder %s112, %s113
    %p127 = scmp.eq.s32.totalorder %s16, 1
    %p128 = por %p126, %p127
    %p130 = scmp.ne.s32.totalorder %s113, %s129
    %p131 = scmp.eq.s32.totalorder %s16, 0
    %p132 = por %p130, %p131
    %p133 = scmp.le.s32.totalorder 1, %s10
    %p134 = scmp.lt.s32.totalorder %s10, 3
    %p135 = pnand %p133, %p134
    %p136 = pneg %p135
    // Predicated region
    $region9: #{embeddings_forward.1} parent=5 // pred_check
      _
    $region10: #{embeddings_forward.1} parent=5 // pred_check_branch
      %138 = sbr.rel (%p135) target = $region12
    $region11: #{embeddings_forward.1} parent=5 // pred_region
      %s139 = ssub.s32 %s10, 1
      // Predicated region
      $region13: #{embeddings_forward.1} parent=11 // pred_check
        %p140 = pneg %p57
      $region14: #{embeddings_forward.1} parent=11 // pred_check_branch
        %142 = sbr.rel (%p140) target = $region16
      $region15: #{embeddings_forward.1} parent=11 // pred_region
        _
      $region16: #{embeddings_forward.1} parent=11 // pred_fallthru
        _
      // Predicated region
      $region17: #{embeddings_forward.1} parent=11 // pred_check
        %p143 = pneg %p78
      $region18: #{embeddings_forward.1} parent=11 // pred_check_branch
        %145 = sbr.rel (%p143) target = $region20
      $region19: #{embeddings_forward.1} parent=11 // pred_region
        _
      $region20: #{embeddings_forward.1} parent=11 // pred_fallthru
        _
      // Predicated region
      $region21: #{embeddings_forward.1} parent=11 // pred_check
        %p146 = pneg %p99
      $region22: #{embeddings_forward.1} parent=11 // pred_check_branch
        %148 = sbr.rel (%p146) target = $region24
      $region23: #{embeddings_forward.1} parent=11 // pred_region
        _
      $region24: #{embeddings_forward.1} parent=11 // pred_fallthru
        _
    $region12: #{embeddings_forward.1} parent=5 // pred_fallthru
      _
    %p149 = scmp.lt.s32.totalorder %s10, 2
    // Predicated region
    $region25: #{embeddings_forward.1} parent=5 // pred_check
      %p150 = pneg %p149
    $region26: #{embeddings_forward.1} parent=5 // pred_check_branch
      %152 = sbr.rel (%p150) target = $region28
    $region27: #{embeddings_forward.1} parent=5 // pred_region
      // Predicated region
      $region29: #{embeddings_forward.1} parent=27 // pred_check
        %p153 = pneg %p30
      $region30: #{embeddings_forward.1} parent=27 // pred_check_branch
        %155 = sbr.rel (%p153) target = $region32
      $region31: #{embeddings_forward.1} parent=27 // pred_region
        %p156 = scmp.lt.s32.totalorder %s10, 1
        %s157 = scalar_select %p156, %s10, 1
        %s158 = smul.addr %s157, 2
        %s159 = smul.addr %s158, 8
        %s160 = scalar_lea.vmem %s0, %s159
      $region32: #{embeddings_forward.1} parent=27 // pred_fallthru
        _
    $region28: #{embeddings_forward.1} parent=5 // pred_fallthru
      _
    %p161 = scmp.le.s32.totalorder 1, %s10
    %p162 = scmp.lt.s32.totalorder %s10, 3
    %p163 = pnand %p161, %p162
    %p164 = pneg %p163
    // Predicated region
    $region33: #{embeddings_forward.1} parent=5 // pred_check
      _
    $region34: #{embeddings_forward.1} parent=5 // pred_check_branch
      %166 = sbr.rel (%p163) target = $region36
    $region35: #{embeddings_forward.1} parent=5 // pred_region
      %s167 = ssub.s32 %s10, 1
      %p168 = scmp.lt.s32.totalorder %s15, 1
      %s169 = scalar_select %p168, %s15, 1
      %s170 = smul.addr %s169, 2
      %s171 = smul.addr %s170, 8
      %s172 = scalar_lea.vmem %s0, %s171
      %p173 = pneg %p36
      %p174 = pneg %p33
      %p175 = pneg %p57
      %p176 = pneg %p54
      %p177 = pneg %p78
      %p178 = pneg %p75
      %p179 = pneg %p99
      %p180 = pneg %p96
      %p181 = pneg %p125
      %p182 = pneg %p122
      %p183 = scmp.lt.s32.totalorder %s15, 1
      %s184 = scalar_select %p183, %s15, 1
      %s185 = smul.addr %s184, 3
      %s186 = smul.addr %s185, 8
      %s187 = scalar_lea.vmem %s4, %s186
      %p188 = scmp.lt.s32.totalorder %s15, 1
      %s189 = scalar_select %p188, %s15, 1
      %s190 = smul.addr %s189, 2
      %s191 = smul.addr %s190, 8
      %s192 = scalar_lea.vmem %s0, %s191
      %p193 = scmp.lt.s32.totalorder %s15, 1
      %s194 = scalar_select %p193, %s15, 1
      %s195 = smul.addr %s194, 3
      %s196 = smul.addr %s195, 8
      %s197 = scalar_lea.vmem %s4, %s196
      %v198 = vld [vmem:[%s2] sm:$0xff]
      %v199 = vld [vmem:[%s2 + $0x8] sm:$0xff]
      %v200 = vld [vmem:[%s3] sm:$0x1]
      %v201 = vld [vmem:[%s192] sm:$0xff]
      %v202 = vld [vmem:[%s192 + $0x8] sm:$0xff]
      %v203 = vld [vmem:[%s1] sm:$0xff]
      %v204 = vld [vmem:[%s1 + $0x8] sm:$0xff]
      %v205 = vld [vmem:[%s1 + $0x10] sm:$0xff]
      %v206 = vld [vmem:[%s1 + $0x18] sm:$0xff]
      %v207 = vld [vmem:[%s1 + $0x20] sm:$0xff]
      %v208 = vld [vmem:[%s1 + $0x28] sm:$0xff]
      %v209 = vld [vmem:[%s1 + $0x30] sm:$0xff]
      %v210 = vld [vmem:[%s1 + $0x38] sm:$0xff]
      %vm211 = vcmask 523264
      %v213 = vsel %vm211, %v201, 0
      %v216 = vsel %vm211, %v202, 0
      %218 = vmatpush.msra.mxu0 0.0
      %219 = vmatpush.msra.mxu0 0.0
      %220 = vmatpush.msra.mxu0 0.0
      %221 = vmatpush.msra.mxu0 0.0
      %222 = vmatpush.msra.mxu0 0.0
      %223 = vmatpush.msra.mxu0 0.0
      %224 = vmatpush.msra.mxu0 0.0
      %225 = vmatpush.msra.mxu0 0.0
      %226 = vmatpush.msra.mxu0 %v210
      %227 = vmatpush.msra.mxu0 %v209
      %228 = vmatpush.msra.mxu0 %v208
      %229 = vmatpush.msra.mxu0 %v207
      %230 = vmatpush.msra.mxu0 %v206
      %231 = vmatpush.msra.mxu0 %v205
      %232 = vmatpush.msra.mxu0 %v204
      %233 = vmatpush.msra.mxu0 %v203
      %234 = vmatmul.f32.gmra.mxu0 %v213
      %v235 = vpop.f32.mrf.mxu0
      %v236 = vadd.f32 0.0, %v235
      %237 = vmatmul.f32.gmra.mxu0 %v216
      %v238 = vpop.f32.mrf.mxu0
      %v239 = vadd.f32 0.0, %v238
      %240 = vdwg.mxu0
      %v241 = vadd.f32 %v236, %v198
      %v242 = vadd.f32 %v239, %v199
      %vm243 = vcmask 261120
      %244 = vst.msk [vmem:[%s197 + $0x1] sm:$0xff] %vm243, %v241
      %245 = vst.msk [vmem:[%s197 + $0x9] sm:$0xff] %vm243, %v242
      %vm246 = vcmask 253952
      %247 = vst.msk [vmem:[%s197] sm:$0x1] %vm246, %v200
      %p248 = scmp.lt.s32.totalorder %s15, 1
      %s249 = scalar_select %p248, %s15, 1
      %s250 = smul.addr %s249, 3
      %s251 = smul.addr %s250, 8
      %s252 = scalar_lea.vmem %s4, %s251
      // Predicated region
      $region37: #{embeddings_forward.1} parent=35 // pred_check
        %p253 = pneg %p122
      $region38: #{embeddings_forward.1} parent=35 // pred_check_branch
        %255 = sbr.rel (%p253) target = $region40
      $region39: #{embeddings_forward.1} parent=35 // pred_region
        _
      $region40: #{embeddings_forward.1} parent=35 // pred_fallthru
        _
    $region36: #{embeddings_forward.1} parent=5 // pred_fallthru
      _
    %p256 = scmp.le.s32.totalorder 2, %s10
    // Predicated region
    $region41: #{embeddings_forward.1} parent=5 // pred_check
      %p257 = pneg %p256
    $region42: #{embeddings_forward.1} parent=5 // pred_check_branch
      %259 = sbr.rel (%p257) target = $region44
    $region43: #{embeddings_forward.1} parent=5 // pred_region
      %s260 = ssub.s32 %s10, 2
      // Predicated region
      $region45: #{embeddings_forward.1} parent=43 // pred_check
        %p261 = pneg %p128
      $region46: #{embeddings_forward.1} parent=43 // pred_check_branch
        %263 = sbr.rel (%p261) target = $region48
      $region47: #{embeddings_forward.1} parent=43 // pred_region
        %p264 = scmp.lt.s32.totalorder %s16, 1
        %s265 = scalar_select %p264, %s16, 1
        %s266 = smul.addr %s265, 3
        %s267 = smul.addr %s266, 8
        %s268 = scalar_lea.vmem %s4, %s267
      $region48: #{embeddings_forward.1} parent=43 // pred_fallthru
        _
    $region44: #{embeddings_forward.1} parent=5 // pred_fallthru
      _
  $region6: #{embeddings_forward.1} parent=0 // loop_footer
    %s14 = sadd.s32 1, %s10
  $region7: #{embeddings_forward.1} parent=0 // loop_footer_branch
    %9 = sbr.rel target = $region3
  $region8: #{embeddings_forward.1} parent=0 // loop_exit
    _

</llo_original>
